<compile_context>
chip_gen: v5e
topology: v5e:2x2
jax: 0.10.0
libtpu: 0.0.40
codegen_flags: <defaults>
</compile_context>

<pallas_src>
import functools

import numpy as np
import jax
import jax.numpy as jnp
from jax.experimental import pallas as pl
from jax.experimental.pallas import tpu as pltpu


def _round_up(x, m):
    return ((x + m - 1) // m) * m


# ----------------------------- Pallas kernels ------------------------------ #

def _nll_body(logits_ref, depth_ref, mask_ref, sum_ref, cnt_ref,
              lsum_sc, lcnt_sc, *, depth_bins, q_scale, ignore_index,
              total_px, tile_px, exact_fit, px_split, num_pp):
    """One (batch-chunk, pixel-tile) grid step.

    logits_ref: (1, C, T) native dtype; depth_ref/mask_ref: (1, 1, T).
    Class axis on sublanes, pixel axis lane-dense.
    """
    g = pl.program_id(0)
    p = pl.program_id(1)

    @pl.when(p == 0)
    def _():
        lsum_sc[...] = jnp.zeros_like(lsum_sc)
        lcnt_sc[...] = jnp.zeros_like(lcnt_sc)

    logits = logits_ref[0]                                   # (C, T) native dtype
    depth = depth_ref[0].astype(jnp.float32)                 # (1, T)
    # clamp so masked / garbage lanes never produce NaN via log()
    depth = jnp.maximum(depth, 1e-30)

    # quantize_depth: round(log(d/alpha) * (bins-1)/log(beta/alpha)), alpha == 1
    tgt = jnp.round(jnp.log(depth) * q_scale).astype(jnp.int32)   # (1, T)

    # validity: target != ignore_index, AND mask on, AND (optionally) in-bounds.
    valid = tgt != ignore_index
    if mask_ref is not None:
        valid = jnp.logical_and(valid, mask_ref[0] != 0)
    if not exact_fit:
        if px_split > 1:
            gp = (g % px_split) * num_pp + p
        else:
            gp = p
        lane = jax.lax.broadcasted_iota(jnp.int32, (1, tile_px), 1)
        valid = jnp.logical_and(valid, gp * tile_px + lane < total_px)

    # log-softmax cross entropy over the class (sublane) axis.
    # max and target-select run on the native dtype (exact); exp/lse in f32.
    m = jnp.max(logits, axis=0, keepdims=True)                     # (1, T) native
    m_f = m.astype(jnp.float32)
    z = logits.astype(jnp.float32) - m_f                           # (C, T) f32
    lse = jnp.log(jnp.sum(jnp.exp(z), axis=0, keepdims=True))      # (1, T)

    cls = jax.lax.broadcasted_iota(jnp.int32, logits.shape, 0)     # (C, T)
    # torch would error on a non-ignored out-of-range bin; we clip (same as ref).
    tgt_c = jnp.clip(tgt, 0, depth_bins - 1)
    # exactly one non-zero element per column -> native-dtype sum is exact
    picked = jnp.sum(jnp.where(cls == tgt_c, logits, jnp.zeros_like(logits)),
                     axis=0, keepdims=True).astype(jnp.float32)    # (1, T)

    # NLL = -(logit[tgt] - m - lse) = lse + m - logit[tgt]
    loss_px = jnp.where(valid, lse + m_f - picked, 0.0)            # (1, T)

    lsum_sc[...] += loss_px
    lcnt_sc[...] += valid.astype(jnp.float32)

    @pl.when(p == pl.num_programs(1) - 1)
    def _():
        sum_ref[...] = jnp.sum(lsum_sc[...], axis=1, keepdims=True).reshape(1, 1, 1)
        cnt_ref[...] = jnp.sum(lcnt_sc[...], axis=1, keepdims=True).reshape(1, 1, 1)


def _nll_kernel_nomask(logits_ref, depth_ref, sum_ref, cnt_ref,
                       lsum_sc, lcnt_sc, **consts):
    _nll_body(logits_ref, depth_ref, None, sum_ref, cnt_ref,
              lsum_sc, lcnt_sc, **consts)


def _nll_kernel_masked(logits_ref, depth_ref, mask_ref, sum_ref, cnt_ref,
                       lsum_sc, lcnt_sc, **consts):
    _nll_body(logits_ref, depth_ref, mask_ref, sum_ref, cnt_ref,
              lsum_sc, lcnt_sc, **consts)


# ------------------------------ JAX wrapper -------------------------------- #

def discrete_nll_loss(pred, target, mask=None, *,
                      min_depth=0.001, max_depth=10.0, depth_bins=64,
                      tile_px=8192):
    """Pallas implementation of DiscreteNLLLoss.forward (mean CE loss scalar).

    pred:   (N, C=depth_bins, H, W) logits (NCHW like torch; f32 or bf16)
    target: (N, H, W) or (N, 1, H, W) float depth
    mask:   optional (N, H, W) or (N, 1, H, W) {0,1}
    """
    if isinstance(pred, dict):
        pred = pred["metric_depth"]

    alpha = 1.0
    zeta = 1.0 - min_depth
    beta = max_depth + zeta
    ignore_index = -(depth_bins + 1)
    q_scale = float((depth_bins - 1) / np.log(beta / alpha))

    if target.ndim == 3:
        target = target[:, None]
    if pred.shape[-2:] != target.shape[-2:]:
        # TODO(synk): bilinear align_corners=True interpolation of `pred` to the
        # target resolution is not implemented; shapes must match.
        raise NotImplementedError("pred/target spatial shapes must match")

    N, C, H, W = pred.shape
    P = H * W

    # contiguous reshapes only (no transpose / extra HBM pass / no dtype casts)
    logits = pred.reshape(N, C, P)
    depth = target.reshape(N, 1, P)
    mask3 = None
    if mask is not None:
        if mask.ndim == 3:
            mask = mask[:, None]
        mask3 = mask.reshape(N, 1, P)
        if jnp.issubdtype(mask3.dtype, jnp.bool_):
            mask3 = mask3.astype(jnp.float32)   # avoid 1-bit VMEM blocks

    # ---- pick a lane-aligned pixel tile -------------------------------------
    logit_bytes = jnp.dtype(logits.dtype).itemsize
    small_bytes = jnp.dtype(depth.dtype).itemsize + (
        jnp.dtype(mask3.dtype).itemsize if mask3 is not None else 0)

    def _vmem_est(t):
        io = 2 * (C * t * logit_bytes + t * small_bytes)     # double-buffered I/O
        tmp = 6 * C * t * 4                                  # in-kernel f32 temps
        scratch = 2 * t * 4                                  # lane-wide accumulators
        return io + tmp + scratch

    p_ceil = _round_up(P, 128)
    tile = max(128, min(_round_up(int(tile_px), 128), p_ceil))
    budget = 40 << 20   # stay comfortably under v7x's 64 MiB physical VMEM
    while tile > 128 and _vmem_est(tile) > budget:
        tile = max(128, _round_up(tile // 2, 128))
    # prefer a divisor of P (exact fit -> no in-bounds mask, no partial block)
    if P % 128 == 0:
        best, t = 128, 128
        while t <= tile:
            if P % t == 0:
                best = t
            t += 128
        if best * 2 >= tile:   # only accept if it doesn't shrink the tile a lot
            tile = best

    num_p = -(-P // tile)

    # ---- megacore occupancy: split the pixel axis when the batch is tiny ----
    px_split = 2 if (N == 1 and num_p >= 2) else 1
    num_pp = -(-num_p // px_split)
    G = N * px_split
    exact_fit = (P % tile == 0) and (num_p % px_split == 0)

    consts = dict(depth_bins=depth_bins, q_scale=q_scale,
                  ignore_index=ignore_index, total_px=P, tile_px=tile,
                  exact_fit=exact_fit, px_split=px_split, num_pp=num_pp)

    if px_split == 1:
        def bat(a, b):
            return a

        def pix(a, b):
            return b
    else:
        def bat(a, b):
            return a // px_split

        def pix(a, b):
            # clamp so an over-run super-chunk re-reads the last real block;
            # its lanes are fully killed by the in-bounds mask.
            return jnp.minimum((a % px_split) * num_pp + b, num_p - 1)

    logits_spec = pl.BlockSpec((1, C, tile), lambda a, b: (bat(a, b), 0, pix(a, b)))
    small_spec = pl.BlockSpec((1, 1, tile), lambda a, b: (bat(a, b), 0, pix(a, b)))
    out_spec = pl.BlockSpec((1, 1, 1), lambda a, b: (a, 0, 0))

    if mask3 is None:
        kernel = functools.partial(_nll_kernel_nomask, **consts)
        in_specs = [logits_spec, small_spec]
        args = (logits, depth)
    else:
        kernel = functools.partial(_nll_kernel_masked, **consts)
        in_specs = [logits_spec, small_spec, small_spec]
        args = (logits, depth, mask3)

    vmem_limit = int(min(max(2 * _vmem_est(tile), 32 << 20), 48 << 20))

    sums, cnts = pl.pallas_call(
        kernel,
        out_shape=(jax.ShapeDtypeStruct((G, 1, 1), jnp.float32),
                   jax.ShapeDtypeStruct((G, 1, 1), jnp.float32)),
        grid_spec=pltpu.PrefetchScalarGridSpec(
            num_scalar_prefetch=0,
            grid=(G, num_pp),
            in_specs=in_specs,
            out_specs=[out_spec, out_spec],
            scratch_shapes=[pltpu.VMEM((1, tile), jnp.float32),
                            pltpu.VMEM((1, tile), jnp.float32)],
        ),
        compiler_params=pltpu.CompilerParams(
            dimension_semantics=("parallel", "arbitrary"),
            vmem_limit_bytes=vmem_limit),
    )(*args)

    # NOTE: if every pixel is masked/ignored this is 0/0 -> NaN, same as torch.
    return jnp.sum(sums) / jnp.sum(cnts)


# --------------------------- pure-JAX reference ---------------------------- #

def _reference_loss(pred, target, mask=None, *,
                    min_depth=0.001, max_depth=10.0, depth_bins=64):
    alpha = 1.0
    zeta = 1.0 - min_depth
    beta = max_depth + zeta
    ignore_index = -(depth_bins + 1)
    q_scale = float((depth_bins - 1) / np.log(beta / alpha))
    if target.ndim == 3:
        target = target[:, None]
    tgt = jnp.round(jnp.log(target.astype(jnp.float32) / alpha) * q_scale)
    tgt = tgt.astype(jnp.int32)
    x = pred.astype(jnp.float32)
    if mask is not None:
        if mask.ndim == 3:
            mask = mask[:, None]
        mk = mask.astype(jnp.int32)
        x = x * mk + (1 - mk) * ignore_index
        tgt = tgt * mk + (1 - mk) * ignore_index
    N, C, H, W = x.shape
    logits = x.reshape(N, C, H * W)
    tgt = tgt.reshape(N, H * W)
    logp = jax.nn.log_softmax(logits, axis=1)
    safe_tgt = jnp.clip(tgt, 0, C - 1)
    nll = -jnp.take_along_axis(logp, safe_tgt[:, None, :], axis=1)[:, 0, :]
    valid = tgt != ignore_index
    return jnp.sum(jnp.where(valid, nll, 0.0)) / jnp.sum(valid)


# --------------------------------- main ------------------------------------ #

if __name__ == "__main__":
    key = jax.random.PRNGKey(0)
    k1, k2, k3 = jax.random.split(key, 3)

    N, depth_bins, H, W = 2, 64, 16, 16
    # predicted per-pixel logits over depth bins (NCHW)
    pred = jax.random.normal(k1, (N, depth_bins, H, W), dtype=jnp.float32)
    # ground-truth depth in [1, 10] so quantized bins are valid class indices
    target = jax.random.uniform(k2, (N, H, W), dtype=jnp.float32,
                                minval=1.0, maxval=10.0)
    mask = (jax.random.uniform(k3, (N, H, W)) > 0.25).astype(jnp.float32)

    # no-mask path
    loss = jax.block_until_ready(
        discrete_nll_loss(pred, target, mask=None,
                          min_depth=0.001, max_depth=10.0,
                          depth_bins=depth_bins))
    ref = jax.block_until_ready(
        _reference_loss(pred, target, min_depth=0.001, max_depth=10.0,
                        depth_bins=depth_bins))
    np.testing.assert_allclose(np.asarray(loss), np.asarray(ref),
                               rtol=1e-4, atol=1e-4)

    # masked path
    loss_m = jax.block_until_ready(
        discrete_nll_loss(pred, target, mask=mask,
                          min_depth=0.001, max_depth=10.0,
                          depth_bins=depth_bins))
    ref_m = jax.block_until_ready(
        _reference_loss(pred, target, mask=mask, min_depth=0.001,
                        max_depth=10.0, depth_bins=depth_bins))
    np.testing.assert_allclose(np.asarray(loss_m), np.asarray(ref_m),
                               rtol=1e-4, atol=1e-4)

    print("KERNEL_OK")
</pallas_src>

<mosaic_0001>
module attributes {stable_mosaic.version = 11 : i64} {
  func.func @_nll_kernel_nomask(%arg0: i32, %arg1: i32, %arg2: memref<1x64x256xf32, #tpu.memory_space<vmem>>, %arg3: memref<1x1x256xf32, #tpu.memory_space<vmem>>, %arg4: memref<1x1x1xf32, #tpu.memory_space<vmem>>, %arg5: memref<1x1x1xf32, #tpu.memory_space<vmem>>, %arg6: memref<1x256xf32, #tpu.memory_space<vmem>>, %arg7: memref<1x256xf32, #tpu.memory_space<vmem>>) attributes {dimension_semantics = [#tpu.dimension_semantics<parallel>, #tpu.dimension_semantics<arbitrary>], iteration_bounds = array<i64: 2, 1>, scalar_prefetch = 0 : i64, scratch_operands = 2 : i64, tpu.core_type = #tpu.core_type<tc>, window_params = [{transform_indices = @transform_0, window_bounds = array<i64: 1, 64, 256>}, {transform_indices = @transform_1, window_bounds = array<i64: 1, 1, 256>}, {transform_indices = @transform_2, window_bounds = array<i64: 1, 1, 1>}, {transform_indices = @transform_3, window_bounds = array<i64: 1, 1, 1>}]} {
    %c0_i32 = arith.constant 0 : i32
    %0 = arith.cmpi eq, %arg1, %c0_i32 : i32
    %1 = arith.extui %0 : i1 to i32
    %c0_i32_0 = arith.constant 0 : i32
    %2 = arith.cmpi ne, %1, %c0_i32_0 : i32
    scf.if %2 {
      %cst_23 = arith.constant 0.000000e+00 : f32
      %50 = vector.broadcast %cst_23 : f32 to vector<1x256xf32>
      %c0_24 = arith.constant 0 : index
      %c0_25 = arith.constant 0 : index
      %51 = vector.load %arg6[%c0_24, %c0_25] : memref<1x256xf32, #tpu.memory_space<vmem>>, vector<1x256xf32>
      tpu.vector_store %arg6[%c0_24, %c0_25], %50 {strides = array<i32>} : memref<1x256xf32, #tpu.memory_space<vmem>>, vector<1x256xf32>,
      %cst_26 = arith.constant 0.000000e+00 : f32
      %52 = vector.broadcast %cst_26 : f32 to vector<1x256xf32>
      %c0_27 = arith.constant 0 : index
      %c0_28 = arith.constant 0 : index
      %53 = vector.load %arg7[%c0_27, %c0_28] : memref<1x256xf32, #tpu.memory_space<vmem>>, vector<1x256xf32>
      tpu.vector_store %arg7[%c0_27, %c0_28], %52 {strides = array<i32>} : memref<1x256xf32, #tpu.memory_space<vmem>>, vector<1x256xf32>,
    } else {
    }
    %c0 = arith.constant 0 : index
    %c0_1 = arith.constant 0 : index
    %c0_2 = arith.constant 0 : index
    %3 = vector.load %arg2[%c0, %c0_1, %c0_2] : memref<1x64x256xf32, #tpu.memory_space<vmem>>, vector<1x64x256xf32>
    %4 = vector.shape_cast %3 : vector<1x64x256xf32> to vector<64x256xf32>
    %c0_3 = arith.constant 0 : index
    %c0_4 = arith.constant 0 : index
    %c0_5 = arith.constant 0 : index
    %5 = vector.load %arg3[%c0_3, %c0_4, %c0_5] : memref<1x1x256xf32, #tpu.memory_space<vmem>>, vector<1x1x256xf32>
    %6 = vector.shape_cast %5 : vector<1x1x256xf32> to vector<1x256xf32>
    %cst = arith.constant 1.000000e-30 : f32
    %7 = vector.broadcast %cst : f32 to vector<1x256xf32>
    %8 = arith.maximumf %6, %7 : vector<1x256xf32>
    %9 = math.log %8 : vector<1x256xf32>
    %cst_6 = arith.constant 26.2740364 : f32
    %10 = vector.broadcast %cst_6 : f32 to vector<1x256xf32>
    %11 = arith.mulf %9, %10 : vector<1x256xf32>
    %12 = math.roundeven %11 : vector<1x256xf32>
    %13 = arith.fptosi %12 : vector<1x256xf32> to vector<1x256xi32>
    %c-65_i32 = arith.constant -65 : i32
    %14 = vector.broadcast %c-65_i32 : i32 to vector<1x256xi32>
    %15 = arith.cmpi ne, %13, %14 : vector<1x256xi32>
    %cst_7 = arith.constant dense<0xFF800000> : vector<256xf32>
    %16 = vector.multi_reduction <maximumf>, %4, %cst_7 [0] : vector<64x256xf32> to vector<256xf32>
    %17 = vector.shape_cast %16 : vector<256xf32> to vector<1x256xf32>
    %18 = vector.broadcast %17 : vector<1x256xf32> to vector<64x256xf32>
    %19 = arith.subf %4, %18 : vector<64x256xf32>
    %20 = math.exp %19 : vector<64x256xf32>
    %cst_8 = arith.constant dense<0.000000e+00> : vector<256xf32>
    %21 = vector.multi_reduction <add>, %20, %cst_8 [0] : vector<64x256xf32> to vector<256xf32>
    %22 = vector.shape_cast %21 : vector<256xf32> to vector<1x256xf32>
    %23 = math.log %22 : vector<1x256xf32>
    %24 = tpu.iota {dimensions = array<i32: 0>} : vector<64x256xi32>
    %c0_i32_9 = arith.constant 0 : i32
    %c63_i32 = arith.constant 63 : i32
    %25 = vector.broadcast %c0_i32_9 : i32 to vector<1x256xi32>
    %26 = arith.maxsi %25, %13 : vector<1x256xi32>
    %27 = vector.broadcast %c63_i32 : i32 to vector<1x256xi32>
    %28 = arith.minsi %27, %26 : vector<1x256xi32>
    %29 = vector.broadcast %28 : vector<1x256xi32> to vector<64x256xi32>
    %30 = arith.cmpi eq, %24, %29 : vector<64x256xi32>
    %cst_10 = arith.constant 0.000000e+00 : f32
    %31 = vector.broadcast %cst_10 : f32 to vector<64x256xf32>
    %32 = arith.select %30, %4, %31 : vector<64x256xi1>, vector<64x256xf32>
    %cst_11 = arith.constant dense<0.000000e+00> : vector<256xf32>
    %33 = vector.multi_reduction <add>, %32, %cst_11 [0] : vector<64x256xf32> to vector<256xf32>
    %34 = vector.shape_cast %33 : vector<256xf32> to vector<1x256xf32>
    %35 = arith.addf %23, %17 : vector<1x256xf32>
    %36 = arith.subf %35, %34 : vector<1x256xf32>
    %cst_12 = arith.constant 0.000000e+00 : f32
    %37 = vector.broadcast %cst_12 : f32 to vector<1x256xf32>
    %38 = arith.select %15, %36, %37 : vector<1x256xi1>, vector<1x256xf32>
    %c0_13 = arith.constant 0 : index
    %c0_14 = arith.constant 0 : index
    %39 = vector.load %arg6[%c0_13, %c0_14] : memref<1x256xf32, #tpu.memory_space<vmem>>, vector<1x256xf32>
    %40 = arith.addf %39, %38 : vector<1x256xf32>
    %c0_15 = arith.constant 0 : index
    %c0_16 = arith.constant 0 : index
    %41 = vector.load %arg6[%c0_15, %c0_16] : memref<1x256xf32, #tpu.memory_space<vmem>>, vector<1x256xf32>
    tpu.vector_store %arg6[%c0_15, %c0_16], %40 {strides = array<i32>} : memref<1x256xf32, #tpu.memory_space<vmem>>, vector<1x256xf32>,
    %c0_17 = arith.constant 0 : index
    %c0_18 = arith.constant 0 : index
    %42 = vector.load %arg7[%c0_17, %c0_18] : memref<1x256xf32, #tpu.memory_space<vmem>>, vector<1x256xf32>
    %43 = arith.extui %15 : vector<1x256xi1> to vector<1x256xi32>
    %44 = arith.sitofp %43 : vector<1x256xi32> to vector<1x256xf32>
    %45 = arith.addf %42, %44 : vector<1x256xf32>
    %c0_19 = arith.constant 0 : index
    %c0_20 = arith.constant 0 : index
    %46 = vector.load %arg7[%c0_19, %c0_20] : memref<1x256xf32, #tpu.memory_space<vmem>>, vector<1x256xf32>
    tpu.vector_store %arg7[%c0_19, %c0_20], %45 {strides = array<i32>} : memref<1x256xf32, #tpu.memory_space<vmem>>, vector<1x256xf32>,
    %c0_i32_21 = arith.constant 0 : i32
    %47 = arith.cmpi eq, %arg1, %c0_i32_21 : i32
    %48 = arith.extui %47 : i1 to i32
    %c0_i32_22 = arith.constant 0 : i32
    %49 = arith.cmpi ne, %48, %c0_i32_22 : i32
    scf.if %49 {
      %c0_23 = arith.constant 0 : index
      %c0_24 = arith.constant 0 : index
      %50 = vector.load %arg6[%c0_23, %c0_24] : memref<1x256xf32, #tpu.memory_space<vmem>>, vector<1x256xf32>
      %cst_25 = arith.constant dense<0.000000e+00> : vector<1xf32>
      %51 = vector.multi_reduction <add>, %50, %cst_25 [1] : vector<1x256xf32> to vector<1xf32>
      %52 = vector.shape_cast %51 : vector<1xf32> to vector<1x1xf32>
      %53 = vector.shape_cast %52 : vector<1x1xf32> to vector<1x1x1xf32>
      %c0_26 = arith.constant 0 : index
      %c0_27 = arith.constant 0 : index
      %c0_28 = arith.constant 0 : index
      %54 = vector.load %arg4[%c0_26, %c0_27, %c0_28] : memref<1x1x1xf32, #tpu.memory_space<vmem>>, vector<1x1x1xf32>
      tpu.vector_store %arg4[%c0_26, %c0_27, %c0_28], %53 {strides = array<i32>} : memref<1x1x1xf32, #tpu.memory_space<vmem>>, vector<1x1x1xf32>,
      %c0_29 = arith.constant 0 : index
      %c0_30 = arith.constant 0 : index
      %55 = vector.load %arg7[%c0_29, %c0_30] : memref<1x256xf32, #tpu.memory_space<vmem>>, vector<1x256xf32>
      %cst_31 = arith.constant dense<0.000000e+00> : vector<1xf32>
      %56 = vector.multi_reduction <add>, %55, %cst_31 [1] : vector<1x256xf32> to vector<1xf32>
      %57 = vector.shape_cast %56 : vector<1xf32> to vector<1x1xf32>
      %58 = vector.shape_cast %57 : vector<1x1xf32> to vector<1x1x1xf32>
      %c0_32 = arith.constant 0 : index
      %c0_33 = arith.constant 0 : index
      %c0_34 = arith.constant 0 : index
      %59 = vector.load %arg5[%c0_32, %c0_33, %c0_34] : memref<1x1x1xf32, #tpu.memory_space<vmem>>, vector<1x1x1xf32>
      tpu.vector_store %arg5[%c0_32, %c0_33, %c0_34], %58 {strides = array<i32>} : memref<1x1x1xf32, #tpu.memory_space<vmem>>, vector<1x1x1xf32>,
    } else {
    }
    return
  }
  func.func @transform_0(%arg0: i32, %arg1: i32) -> (i32, i32, i32) {
    %c0_i32 = arith.constant 0 : i32
    %c0_i32_0 = arith.constant 0 : i32
    return %arg0, %c0_i32, %arg1 : i32, i32, i32
  }
  func.func @transform_1(%arg0: i32, %arg1: i32) -> (i32, i32, i32) {
    %c0_i32 = arith.constant 0 : i32
    %c0_i32_0 = arith.constant 0 : i32
    return %arg0, %c0_i32, %arg1 : i32, i32, i32
  }
  func.func @transform_2(%arg0: i32, %arg1: i32) -> (i32, i32, i32) {
    %c0_i32 = arith.constant 0 : i32
    %c0_i32_0 = arith.constant 0 : i32
    %c0_i32_1 = arith.constant 0 : i32
    return %arg0, %c0_i32, %c0_i32_0 : i32, i32, i32
  }
  func.func @transform_3(%arg0: i32, %arg1: i32) -> (i32, i32, i32) {
    %c0_i32 = arith.constant 0 : i32
    %c0_i32_0 = arith.constant 0 : i32
    %c0_i32_1 = arith.constant 0 : i32
    return %arg0, %c0_i32, %c0_i32_0 : i32, i32, i32
  }
}

</mosaic_0001>

<llo_original>
// kernel: tpu_custom_call.1
$region0: #{tpu_custom_call.1}
  #allocation0 [shape = 'u32[]', space=smem, size = 0x4, offset = 0x4, fixed_abs, tag = 'smem constant byte address 0x4 - core index']
  #allocation1 [shape = 'u32[72,128]{1,0:T(1,128)}', space=vmem, size = 0x9000, scoped, tag = 'internal scratch']
  #allocation2 [shape = 'f32[1,256]{1,0:T(1,128)}', space=vmem, size = 0x400, scoped, tag = 'scratch operand']
  #allocation3 [shape = 'f32[1,256]{1,0:T(1,128)}', space=vmem, size = 0x400, scoped, tag = 'scratch operand']
  %s0 = inlined_call_operand.hbm [shape: f32[2,64,256], index: 0, kind: input, shape index: {}]
  %s1 = inlined_call_operand.hbm [shape: f32[2,1,256], index: 1, kind: input, shape index: {}]
  %s2 = inlined_call_operand.vmem [shape: f32[2,1,1], index: 2, kind: output, shape index: {0}]
  %s3 = inlined_call_operand.vmem [shape: f32[2,1,1], index: 3, kind: output, shape index: {1}]
  %4 = xla_tuple %s2, %s3
  %s5 = sld [smem:[#allocation0]]
  $region65: #{tpu_custom_call.1} parent=0
    _
  %s7 = ssub.s32 1, %s5
  %s8 = scalar_select 0, %s7, %s5
  $region1: #{tpu_custom_call.1} parent=0
    #allocation4 [shape = 'u8[131072]{0}', space=vmem, size = 0x20000, scoped, tag = 'input window, operand 0']
    #allocation5 [shape = 's32[2]{0}', space=sflag, size = 0x8, scoped, tag = 'scoped memory for tpu_custom_call.1']
    #allocation6 [shape = 'u8[2048]{0}', space=vmem, size = 0x800, scoped, tag = 'input window, operand 1']
    #allocation7 [shape = 's32[2]{0}', space=sflag, size = 0x8, scoped, tag = 'scoped memory for tpu_custom_call.1']
    %9 = vsyncpa [#allocation5], 0
    %s10 = scalar_lea.sflag [#allocation5], 1
    %11 = vsyncpa %s10, 0
    %12 = vsyncpa [#allocation7], 0
    %s13 = scalar_lea.sflag [#allocation7], 1
    %14 = vsyncpa %s13, 0
    loop: start=0, step=1, limit=4
    $region2: #{tpu_custom_call.1} parent=1 // loop_pre_header
      _
    $region3: #{tpu_custom_call.1} parent=1 // loop_header
      %s16 = sphi 0, %s20
      %p17 = scmp.ge.s32.totalorder %s16, 4
      %s23 = sphi 0, %s35
      %s24 = sphi 0, %s31
      %s25 = sphi 0, %s23
      %s26 = sphi 0, %s24
      %s27 = sphi 0, %s25
      %s28 = sphi 0, %s26
      %s40 = sphi 0, %s42
      %s43 = sphi 0, %s40
      %s44 = sphi 0, %s43
      %s60 = sphi 0, %s44
      %s68 = sphi 0, %s70
      %s71 = sphi 0, %s68
      %s72 = sphi 0, %s71
      %s88 = sphi 0, %s72
      %s94 = sphi 0, %s96
      %s97 = sphi 0, %s94
      %s98 = sphi 0, %s97
      %s114 = sphi 0, %s98
      %s120 = sphi 0, %s122
      %s123 = sphi 0, %s120
      %s124 = sphi 0, %s123
      %s140 = sphi 0, %s124
    $region4: #{tpu_custom_call.1} parent=1 // loop_header_branch
      %19 = sbr.rel (%p17) target = $region8
    $region5: #{tpu_custom_call.1} parent=1 // loop_body
      %s21 = ssub.s32 %s16, 1
      %s22 = ssub.s32 %s16, 2
      %s29 = sadd.s32 1, %s24
      %p30 = scmp.ge.s32.totalorder %s29, 1
      %s31 = scalar_select %p30, 0, %s29
      %s32 = sadd.s32 1, %s23
      %s33 = scalar_select %p30, %s32, %s23
      %p34 = scmp.ge.s32.totalorder %s33, 2
      %s35 = scalar_select %p34, 0, %s33
      %s36 = ssub.s32 %s23, %s35
      %s37 = ssub.s32 %s24, %s31
      %s38 = sor.u32 %s36, %s37
      %p39 = scmp.eq.s32.totalorder %s38, 0
      %s41 = sadd.s32 %s40, 1
      %s42 = scalar_select %p39, %s40, %s41
      %p45 = pneg %p39
      %p46 = scmp.eq.s32.totalorder %s16, 1
      %p47 = por %p45, %p46
      %p48 = scmp.ne.s32.totalorder %s40, %s43
      %p49 = scmp.eq.s32.totalorder %s16, 0
      %p50 = por %p48, %p49
      %p51 = scmp.ne.s32.totalorder %s40, %s43
      %p52 = scmp.eq.s32.totalorder %s21, 1
      %p53 = por %p51, %p52
      %p54 = scmp.ne.s32.totalorder %s43, %s44
      %p55 = scmp.eq.s32.totalorder %s21, 0
      %p56 = por %p54, %p55
      %p57 = scmp.ne.s32.totalorder %s43, %s44
      %p58 = scmp.eq.s32.totalorder %s22, 1
      %p59 = por %p57, %p58
      %p61 = scmp.ne.s32.totalorder %s44, %s60
      %p62 = scmp.eq.s32.totalorder %s22, 0
      %p63 = por %p61, %p62
      %s64 = ssub.s32 %s23, %s35
      %s65 = ssub.s32 %s24, %s31
      %s66 = sor.u32 %s64, %s65
      %p67 = scmp.eq.s32.totalorder %s66, 0
      %s69 = sadd.s32 %s68, 1
      %s70 = scalar_select %p67, %s68, %s69
      %p73 = pneg %p67
      %p74 = scmp.eq.s32.totalorder %s16, 1
      %p75 = por %p73, %p74
      %p76 = scmp.ne.s32.totalorder %s68, %s71
      %p77 = scmp.eq.s32.totalorder %s16, 0
      %p78 = por %p76, %p77
      %p79 = scmp.ne.s32.totalorder %s68, %s71
      %p80 = scmp.eq.s32.totalorder %s21, 1
      %p81 = por %p79, %p80
      %p82 = scmp.ne.s32.totalorder %s71, %s72
      %p83 = scmp.eq.s32.totalorder %s21, 0
      %p84 = por %p82, %p83
      %p85 = scmp.ne.s32.totalorder %s71, %s72
      %p86 = scmp.eq.s32.totalorder %s22, 1
      %p87 = por %p85, %p86
      %p89 = scmp.ne.s32.totalorder %s72, %s88
      %p90 = scmp.eq.s32.totalorder %s22, 0
      %p91 = por %p89, %p90
      %s92 = ssub.s32 %s23, %s35
      %p93 = scmp.eq.s32.totalorder %s92, 0
      %s95 = sadd.s32 %s94, 1
      %s96 = scalar_select %p93, %s94, %s95
      %p99 = pneg %p93
      %p100 = scmp.eq.s32.totalorder %s16, 1
      %p101 = por %p99, %p100
      %p102 = scmp.ne.s32.totalorder %s94, %s97
      %p103 = scmp.eq.s32.totalorder %s16, 0
      %p104 = por %p102, %p103
      %p105 = scmp.ne.s32.totalorder %s94, %s97
      %p106 = scmp.eq.s32.totalorder %s21, 1
      %p107 = por %p105, %p106
      %p108 = scmp.ne.s32.totalorder %s97, %s98
      %p109 = scmp.eq.s32.totalorder %s21, 0
      %p110 = por %p108, %p109
      %p111 = scmp.ne.s32.totalorder %s97, %s98
      %p112 = scmp.eq.s32.totalorder %s22, 1
      %p113 = por %p111, %p112
      %p115 = scmp.ne.s32.totalorder %s98, %s114
      %p116 = scmp.eq.s32.totalorder %s22, 0
      %p117 = por %p115, %p116
      %s118 = ssub.s32 %s23, %s35
      %p119 = scmp.eq.s32.totalorder %s118, 0
      %s121 = sadd.s32 %s120, 1
      %s122 = scalar_select %p119, %s120, %s121
      %p125 = pneg %p119
      %p126 = scmp.eq.s32.totalorder %s16, 1
      %p127 = por %p125, %p126
      %p128 = scmp.ne.s32.totalorder %s120, %s123
      %p129 = scmp.eq.s32.totalorder %s16, 0
      %p130 = por %p128, %p129
      %p131 = scmp.ne.s32.totalorder %s120, %s123
      %p132 = scmp.eq.s32.totalorder %s21, 1
      %p133 = por %p131, %p132
      %p134 = scmp.ne.s32.totalorder %s123, %s124
      %p135 = scmp.eq.s32.totalorder %s21, 0
      %p136 = por %p134, %p135
      %p137 = scmp.ne.s32.totalorder %s123, %s124
      %p138 = scmp.eq.s32.totalorder %s22, 1
      %p139 = por %p137, %p138
      %p141 = scmp.ne.s32.totalorder %s124, %s140
      %p142 = scmp.eq.s32.totalorder %s22, 0
      %p143 = por %p141, %p142
      %p144 = scmp.le.s32.totalorder 1, %s16
      %p145 = scmp.lt.s32.totalorder %s16, 3
      %p146 = pnand %p144, %p145
      %p147 = pneg %p146
      // Predicated region
      $region9: #{tpu_custom_call.1} parent=5 // pred_check
        _
      $region10: #{tpu_custom_call.1} parent=5 // pred_check_branch
        %149 = sbr.rel (%p146) target = $region12
      $region11: #{tpu_custom_call.1} parent=5 // pred_region
        %s150 = ssub.s32 %s16, 1
      $region12: #{tpu_custom_call.1} parent=5 // pred_fallthru
        _
      %p151 = scmp.lt.s32.totalorder %s16, 2
      // Predicated region
      $region13: #{tpu_custom_call.1} parent=5 // pred_check
        %p152 = pneg %p151
      $region14: #{tpu_custom_call.1} parent=5 // pred_check_branch
        %154 = sbr.rel (%p152) target = $region16
      $region15: #{tpu_custom_call.1} parent=5 // pred_region
        // Predicated region
        $region17: #{tpu_custom_call.1} parent=15 // pred_check
          %p155 = pneg %p50
        $region18: #{tpu_custom_call.1} parent=15 // pred_check_branch
          %157 = sbr.rel (%p155) target = $region20
        $region19: #{tpu_custom_call.1} parent=15 // pred_region
          %s158 = sand.u32 %s40, 1
          %s159 = scalar_lea.sflag [#allocation5], %s158
          %s160 = sand.u32 %s40, 1
          %s161 = smul.addr %s160, 128
          %s162 = scalar_lea.vmem [#allocation4], %s161
          %s163 = smul.u32 2, %s24
          %165 = vsyncadd %s159, 0
          %s166 = smul.addr %s23, 16
          %s167 = sadd.s32 %s163, %s166
          %s168 = smul.addr %s167, 8
          %s169 = scalar_lea.hbm %s0, %s168
          %s170 = sshll.u32 %s169, 4
          %s171 = int_to_ptr.hbm [resolvable:$true] %s170
          %s172 = sshll.u32 %s162, 4
          %s173 = int_to_ptr.vmem [resolvable:$true] %s172
          %178 = dma.hbm_to_vmem [thread:$0]  %s171, 2048, %s173, %s159, 256, 256, 16
        $region20: #{tpu_custom_call.1} parent=15 // pred_fallthru
          _
        // Predicated region
        $region21: #{tpu_custom_call.1} parent=15 // pred_check
          %p179 = pneg %p78
        $region22: #{tpu_custom_call.1} parent=15 // pred_check_branch
          %181 = sbr.rel (%p179) target = $region24
        $region23: #{tpu_custom_call.1} parent=15 // pred_region
          %s182 = sand.u32 %s68, 1
          %s183 = scalar_lea.sflag [#allocation7], %s182
          %s184 = sand.u32 %s68, 1
          %s185 = smul.addr %s184, 2
          %s186 = scalar_lea.vmem [#allocation6], %s185
          %s187 = smul.u32 2, %s24
          %189 = vsyncadd %s183, 0
          %s190 = smul.addr %s23, 2
          %s191 = sadd.s32 %s187, %s190
          %s192 = scalar_lea.hbm %s1, %s191
          %s194 = sshll.u32 %s192, 4
          %s195 = int_to_ptr.hbm [resolvable:$true] %s194
          %s196 = sshll.u32 %s186, 4
          %s197 = int_to_ptr.vmem [resolvable:$true] %s196
          %199 = dma.hbm_to_vmem [thread:$0]  %s195, 32, %s197, %s183
        $region24: #{tpu_custom_call.1} parent=15 // pred_fallthru
          _
      $region16: #{tpu_custom_call.1} parent=5 // pred_fallthru
        _
      %p200 = scmp.le.s32.totalorder 1, %s16
      %p201 = scmp.lt.s32.totalorder %s16, 3
      %p202 = pnand %p200, %p201
      %p203 = pneg %p202
      // Predicated region
      $region25: #{tpu_custom_call.1} parent=5 // pred_check
        _
      $region26: #{tpu_custom_call.1} parent=5 // pred_check_branch
        %205 = sbr.rel (%p202) target = $region28
      $region27: #{tpu_custom_call.1} parent=5 // pred_region
        %s206 = ssub.s32 %s16, 1
        %s207 = sand.u32 %s43, 1
        %s208 = scalar_lea.sflag [#allocation5], %s207
        %s209 = sand.u32 %s43, 1
        %s210 = smul.addr %s209, 128
        %s211 = scalar_lea.vmem [#allocation4], %s210
        // Predicated region
        $region29: #{tpu_custom_call.1} parent=27 // pred_check
          %p212 = pneg %p56
        $region30: #{tpu_custom_call.1} parent=27 // pred_check_branch
          %214 = sbr.rel (%p212) target = $region32
        $region31: #{tpu_custom_call.1} parent=27 // pred_region
          %216 = dma.done %s208, 2048
        $region32: #{tpu_custom_call.1} parent=27 // pred_fallthru
          _
        %s217 = sand.u32 %s71, 1
        %s218 = scalar_lea.sflag [#allocation7], %s217
        %s219 = sand.u32 %s71, 1
        %s220 = smul.addr %s219, 2
        %s221 = scalar_lea.vmem [#allocation6], %s220
        // Predicated region
        $region33: #{tpu_custom_call.1} parent=27 // pred_check
          %p222 = pneg %p84
        $region34: #{tpu_custom_call.1} parent=27 // pred_check_branch
          %224 = sbr.rel (%p222) target = $region36
        $region35: #{tpu_custom_call.1} parent=27 // pred_region
          %226 = dma.done %s218, 32
        $region36: #{tpu_custom_call.1} parent=27 // pred_fallthru
          _
        %s227 = sand.u32 %s43, 1
        %s228 = scalar_lea.sflag [#allocation5], %s227
        %s229 = sand.u32 %s43, 1
        %s230 = smul.addr %s229, 128
        %s231 = scalar_lea.vmem [#allocation4], %s230
        %p232 = pneg %p56
        %p233 = pneg %p53
        %s234 = sand.u32 %s71, 1
        %s235 = scalar_lea.sflag [#allocation7], %s234
        %s236 = sand.u32 %s71, 1
        %s237 = smul.addr %s236, 2
        %s238 = scalar_lea.vmem [#allocation6], %s237
        %p239 = pneg %p84
        %p240 = pneg %p81
        %p241 = pneg %p110
        %p242 = pneg %p107
        %p243 = scmp.lt.s32.totalorder %s25, 1
        %s244 = scalar_select %p243, %s25, 1
        %s245 = scalar_lea.vmem %s2, %s244
        %p246 = pneg %p136
        %p247 = pneg %p133
        %p248 = scmp.lt.s32.totalorder %s25, 1
        %s249 = scalar_select %p248, %s25, 1
        %s250 = scalar_lea.vmem %s3, %s249
        %s251 = smul.u32 2, %s26
        %s252 = smul.u32 2, %s26
        %p253 = scmp.lt.s32.totalorder %s25, 1
        %s254 = scalar_select %p253, %s25, 1
        %s255 = scalar_lea.vmem %s2, %s254
        %p256 = scmp.lt.s32.totalorder %s25, 1
        %s257 = scalar_select %p256, %s25, 1
        %s258 = scalar_lea.vmem %s3, %s257
        %p259 = scmp.eq.s32.totalorder %s26, 0
        // Predicated region
        $region37: #{tpu_custom_call.1} parent=27 // pred_check
          %p260 = pneg %p259
        $region38: #{tpu_custom_call.1} parent=27 // pred_check_branch
          %262 = sbr.rel (%p260) target = $region40
        $region39: #{tpu_custom_call.1} parent=27 // pred_region
          %v263 = vlaneseq
          %vm264 = vcmp.ge.s32.totalorder %v263, 0
          %vm265 = vcmp.lt.s32.totalorder %v263, 256
          %vm266 = vmand %vm264, %vm265
          %267 = vst.msk [vmem:[#allocation2] sm:$0x3] %vm266, 0.0
          %268 = vst.msk [vmem:[#allocation3] sm:$0x3] %vm266, 0.0
        $region40: #{tpu_custom_call.1} parent=27 // pred_fallthru
          _
        %v269 = vld [vmem:[%s211] sm:$0xff]
        %v270 = vld [vmem:[%s211 + $0x8] sm:$0xff]
        %v271 = vld [vmem:[%s211 + $0x10] sm:$0xff]
        %v272 = vld [vmem:[%s211 + $0x18] sm:$0xff]
        %v273 = vld [vmem:[%s211 + $0x20] sm:$0xff]
        %v274 = vld [vmem:[%s211 + $0x28] sm:$0xff]
        %v275 = vld [vmem:[%s211 + $0x30] sm:$0xff]
        %v276 = vld [vmem:[%s211 + $0x38] sm:$0xff]
        %v277 = vld [vmem:[%s211 + $0x40] sm:$0xff]
        %v278 = vld [vmem:[%s211 + $0x48] sm:$0xff]
        %v279 = vld [vmem:[%s211 + $0x50] sm:$0xff]
        %v280 = vld [vmem:[%s211 + $0x58] sm:$0xff]
        %v281 = vld [vmem:[%s211 + $0x60] sm:$0xff]
        %v282 = vld [vmem:[%s211 + $0x68] sm:$0xff]
        %v283 = vld [vmem:[%s211 + $0x70] sm:$0xff]
        %v284 = vld [vmem:[%s211 + $0x78] sm:$0xff]
        %v285 = vld [vmem:[%s221] sm:$0x3]
        %v286 = vmax.f32 %v285, 1e-30
        %v287 = vlog2.pop %v286
        %v288 = vmul.f32 %v287, 0.6931472
        %v289 = vmul.f32 %v288, 26.274036
        %v290 = vcvt.f32.s32.ties.to.even %v289
        %vm291 = vcmp.ne.s32.totalorder %v290, 4294967231
        %v292 = vmax.f32 %v269, %v273
        %v293 = vmax.f32 %v271, %v275
        %v294 = vmax.f32 %v292, %v277
        %v295 = vmax.f32 %v293, %v279
        %v296 = vmax.f32 %v294, %v281
        %v297 = vmax.f32 %v295, %v283
        %v298 = vmax.f32 %v296, %v297
        %v299 = vrot.slane %v298, 4
        %v300 = vmax.f32 %v298, %v299
        %v301 = vrot.slane %v300, 2
        %v302 = vmax.f32 %v300, %v301
        %v303 = vrot.slane %v302, 1
        %v304 = vmax.f32 %v302, %v303
        %v305 = vmax.f32 %v270, %v274
        %v306 = vmax.f32 %v272, %v276
        %v307 = vmax.f32 %v305, %v278
        %v308 = vmax.f32 %v306, %v280
        %v309 = vmax.f32 %v307, %v282
        %v310 = vmax.f32 %v308, %v284
        %v311 = vmax.f32 %v309, %v310
        %v312 = vrot.slane %v311, 4
        %v313 = vmax.f32 %v311, %v312
        %v314 = vrot.slane %v313, 2
        %v315 = vmax.f32 %v313, %v314
        %v316 = vrot.slane %v315, 1
        %v317 = vmax.f32 %v315, %v316
        %v318 = vsub.f32 %v269, %v304
        %v319 = vsub.f32 %v270, %v317
        %v320 = vsub.f32 %v271, %v304
        %v321 = vsub.f32 %v272, %v317
        %v322 = vsub.f32 %v273, %v304
        %v323 = vsub.f32 %v274, %v317
        %v324 = vsub.f32 %v275, %v304
        %v325 = vsub.f32 %v276, %v317
        %v326 = vsub.f32 %v277, %v304
        %v327 = vsub.f32 %v278, %v317
        %v328 = vsub.f32 %v279, %v304
        %v329 = vsub.f32 %v280, %v317
        %v330 = vsub.f32 %v281, %v304
        %v331 = vsub.f32 %v282, %v317
        %v332 = vsub.f32 %v283, %v304
        %v333 = vsub.f32 %v284, %v317
        %v334 = vmul.f32 %v318, 1.442695
        %v335 = vpow.pop %v334
        %v336 = vmul.f32 %v319, 1.442695
        %v337 = vpow.pop %v336
        %v338 = vmul.f32 %v320, 1.442695
        %v339 = vpow.pop %v338
        %v340 = vmul.f32 %v321, 1.442695
        %v341 = vpow.pop %v340
        %v342 = vmul.f32 %v322, 1.442695
        %v343 = vpow.pop %v342
        %v344 = vmul.f32 %v323, 1.442695
        %v345 = vpow.pop %v344
        %v346 = vmul.f32 %v324, 1.442695
        %v347 = vpow.pop %v346
        %v348 = vmul.f32 %v325, 1.442695
        %v349 = vpow.pop %v348
        %v350 = vmul.f32 %v326, 1.442695
        %v351 = vpow.pop %v350
        %v352 = vmul.f32 %v327, 1.442695
        %v353 = vpow.pop %v352
        %v354 = vmul.f32 %v328, 1.442695
        %v355 = vpow.pop %v354
        %v356 = vmul.f32 %v329, 1.442695
        %v357 = vpow.pop %v356
        %v358 = vmul.f32 %v330, 1.442695
        %v359 = vpow.pop %v358
        %v360 = vmul.f32 %v331, 1.442695
        %v361 = vpow.pop %v360
        %v362 = vmul.f32 %v332, 1.442695
        %v363 = vpow.pop %v362
        %v364 = vmul.f32 %v333, 1.442695
        %v365 = vpow.pop %v364
        %v366 = vadd.f32 %v335, %v339
        %v367 = vadd.f32 %v366, %v343
        %v368 = vadd.f32 %v367, %v347
        %v369 = vadd.f32 %v368, %v351
        %v370 = vadd.f32 %v369, %v355
        %v371 = vadd.f32 %v370, %v359
        %v372 = vadd.f32 %v371, %v363
        %v373 = vrot.slane %v372, 4
        %v374 = vadd.f32 %v372, %v373
        %v375 = vrot.slane %v374, 2
        %v376 = vadd.f32 %v374, %v375
        %v377 = vrot.slane %v376, 1
        %v378 = vadd.f32 %v376, %v377
        %v379 = vadd.f32 %v337, %v341
        %v380 = vadd.f32 %v379, %v345
        %v381 = vadd.f32 %v380, %v349
        %v382 = vadd.f32 %v381, %v353
        %v383 = vadd.f32 %v382, %v357
        %v384 = vadd.f32 %v383, %v361
        %v385 = vadd.f32 %v384, %v365
        %v386 = vrot.slane %v385, 4
        %v387 = vadd.f32 %v385, %v386
        %v388 = vrot.slane %v387, 2
        %v389 = vadd.f32 %v387, %v388
        %v390 = vrot.slane %v389, 1
        %v391 = vadd.f32 %v389, %v390
        %v392 = vlog2.pop %v378
        %v393 = vmul.f32 %v392, 0.6931472
        %v394 = vlog2.pop %v391
        %v395 = vmul.f32 %v394, 0.6931472
        %v396 = vlaneseq
        %v397 = vshrl.u32 %v396, 7
        %v398 = vadd.s32 %v397, 8
        %v399 = vadd.s32 %v397, 16
        %v400 = vadd.s32 %v397, 24
        %v401 = vadd.s32 %v397, 32
        %v402 = vadd.s32 %v397, 40
        %v403 = vadd.s32 %v397, 48
        %v404 = vadd.s32 %v397, 56
        %vm405 = vcmp.gt.s32.totalorder %v290, 0
        %v406 = vsel %vm405, %v290, 0
        %vm407 = vcmp.lt.s32.totalorder %v406, 63
        %v408 = vsel %vm407, %v406, 63
        %v409 = vperm.slane %v408, 0
        %v410 = vperm.slane %v408, 1
        %vm411 = vcmp.eq.s32.totalorder %v397, %v409
        %vm412 = vcmp.eq.s32.totalorder %v397, %v410
        %vm413 = vcmp.eq.s32.totalorder %v398, %v409
        %vm414 = vcmp.eq.s32.totalorder %v398, %v410
        %vm415 = vcmp.eq.s32.totalorder %v399, %v409
        %vm416 = vcmp.eq.s32.totalorder %v399, %v410
        %vm417 = vcmp.eq.s32.totalorder %v400, %v409
        %vm418 = vcmp.eq.s32.totalorder %v400, %v410
        %vm419 = vcmp.eq.s32.totalorder %v401, %v409
        %vm420 = vcmp.eq.s32.totalorder %v401, %v410
        %vm421 = vcmp.eq.s32.totalorder %v402, %v409
        %vm422 = vcmp.eq.s32.totalorder %v402, %v410
        %vm423 = vcmp.eq.s32.totalorder %v403, %v409
        %vm424 = vcmp.eq.s32.totalorder %v403, %v410
        %vm425 = vcmp.eq.s32.totalorder %v404, %v409
        %vm426 = vcmp.eq.s32.totalorder %v404, %v410
        %v427 = vsel %vm411, %v269, 0.0
        %v428 = vsel %vm412, %v270, 0.0
        %v429 = vsel %vm413, %v271, 0.0
        %v430 = vsel %vm414, %v272, 0.0
        %v431 = vsel %vm415, %v273, 0.0
        %v432 = vsel %vm416, %v274, 0.0
        %v433 = vsel %vm417, %v275, 0.0
        %v434 = vsel %vm418, %v276, 0.0
        %v435 = vsel %vm419, %v277, 0.0
        %v436 = vsel %vm420, %v278, 0.0
        %v437 = vsel %vm421, %v279, 0.0
        %v438 = vsel %vm422, %v280, 0.0
        %v439 = vsel %vm423, %v281, 0.0
        %v440 = vsel %vm424, %v282, 0.0
        %v441 = vsel %vm425, %v283, 0.0
        %v442 = vsel %vm426, %v284, 0.0
        %v443 = vadd.f32 %v427, %v429
        %v444 = vadd.f32 %v443, %v431
        %v445 = vadd.f32 %v444, %v433
        %v446 = vadd.f32 %v445, %v435
        %v447 = vadd.f32 %v446, %v437
        %v448 = vadd.f32 %v447, %v439
        %v449 = vadd.f32 %v448, %v441
        %v450 = vrot.slane %v449, 4
        %v451 = vadd.f32 %v449, %v450
        %v452 = vrot.slane %v451, 2
        %v453 = vadd.f32 %v451, %v452
        %v454 = vrot.slane %v453, 1
        %v455 = vadd.f32 %v453, %v454
        %v456 = vadd.f32 %v428, %v430
        %v457 = vadd.f32 %v456, %v432
        %v458 = vadd.f32 %v457, %v434
        %v459 = vadd.f32 %v458, %v436
        %v460 = vadd.f32 %v459, %v438
        %v461 = vadd.f32 %v460, %v440
        %v462 = vadd.f32 %v461, %v442
        %v463 = vrot.slane %v462, 4
        %v464 = vadd.f32 %v462, %v463
        %v465 = vrot.slane %v464, 2
        %v466 = vadd.f32 %v464, %v465
        %v467 = vrot.slane %v466, 1
        %v468 = vadd.f32 %v466, %v467
        %v469 = vadd.f32 %v393, %v304
        %v470 = vadd.f32 %v395, %v317
        %v471 = vsub.f32 %v469, %v455
        %v472 = vsub.f32 %v470, %v468
        %v475 = vrot.slane %v472, 7
        %vm476 = vcmask 1040384
        %v477 = vsel %vm476, %v471, %v475
        %v479 = vsel %vm291, %v477, 0.0
        %v480 = vld [vmem:[#allocation2] sm:$0x3]
        %v481 = vadd.f32 %v480, %v479
        %v482 = vlaneseq
        %vm483 = vcmp.ge.s32.totalorder %v482, 0
        %vm484 = vcmp.lt.s32.totalorder %v482, 256
        %vm485 = vmand %vm483, %vm484
        %486 = vst.msk [vmem:[#allocation2] sm:$0x3] %vm485, %v481
        %v487 = vld [vmem:[#allocation3] sm:$0x3]
        %v488 = vsel %vm291, 1, 0
        %v489 = vcvt.s32.f32 %v488
        %v490 = vadd.f32 %v487, %v489
        %491 = vst.msk [vmem:[#allocation3] sm:$0x3] %vm485, %v490
        // Predicated region
        $region41: #{tpu_custom_call.1} parent=27 // pred_check
          %p492 = pneg %p259
        $region42: #{tpu_custom_call.1} parent=27 // pred_check_branch
          %494 = sbr.rel (%p492) target = $region44
        $region43: #{tpu_custom_call.1} parent=27 // pred_region
          %v495 = vld [vmem:[#allocation2] sm:$0x3]
          %v497 = vperm.slane %v495, 0
          %v498 = vperm.slane %v495, 1
          %v501 = vsel %vm476, %v497, 0.0
          %v502 = vsel %vm476, %v498, 0.0
          %v503 = vadd.f32 %v501, %v502
          %504 = vadd.xlane.f32.xlu0 %v503
          %v505 = vpop.xlane.xlu0 %504
          %vm506 = vcmask 0
          %507 = vst.msk [vmem:[%s255] sm:$0x1] %vm506, %v505
          %v508 = vld [vmem:[#allocation3] sm:$0x3]
          %v510 = vperm.slane %v508, 0
          %v511 = vperm.slane %v508, 1
          %v514 = vsel %vm476, %v510, 0.0
          %v515 = vsel %vm476, %v511, 0.0
          %v516 = vadd.f32 %v514, %v515
          %517 = vadd.xlane.f32.xlu0 %v516
          %v518 = vpop.xlane.xlu0 %517
          %519 = vst.msk [vmem:[%s258] sm:$0x1] %vm506, %v518
        $region44: #{tpu_custom_call.1} parent=27 // pred_fallthru
          _
        %p520 = scmp.lt.s32.totalorder %s25, 1
        %s521 = scalar_select %p520, %s25, 1
        %s522 = scalar_lea.vmem %s2, %s521
        %p523 = scmp.lt.s32.totalorder %s25, 1
        %s524 = scalar_select %p523, %s25, 1
        %s525 = scalar_lea.vmem %s3, %s524
        // Predicated region
        $region45: #{tpu_custom_call.1} parent=27 // pred_check
          %p526 = pneg %p107
        $region46: #{tpu_custom_call.1} parent=27 // pred_check_branch
          %528 = sbr.rel (%p526) target = $region48
        $region47: #{tpu_custom_call.1} parent=27 // pred_region
          _
        $region48: #{tpu_custom_call.1} parent=27 // pred_fallthru
          _
        // Predicated region
        $region49: #{tpu_custom_call.1} parent=27 // pred_check
          %p529 = pneg %p133
        $region50: #{tpu_custom_call.1} parent=27 // pred_check_branch
          %531 = sbr.rel (%p529) target = $region52
        $region51: #{tpu_custom_call.1} parent=27 // pred_region
          _
        $region52: #{tpu_custom_call.1} parent=27 // pred_fallthru
          _
      $region28: #{tpu_custom_call.1} parent=5 // pred_fallthru
        _
      %p532 = scmp.le.s32.totalorder 2, %s16
      // Predicated region
      $region53: #{tpu_custom_call.1} parent=5 // pred_check
        %p533 = pneg %p532
      $region54: #{tpu_custom_call.1} parent=5 // pred_check_branch
        %535 = sbr.rel (%p533) target = $region56
      $region55: #{tpu_custom_call.1} parent=5 // pred_region
        %s536 = ssub.s32 %s16, 2
        // Predicated region
        $region57: #{tpu_custom_call.1} parent=55 // pred_check
          %p537 = pneg %p113
        $region58: #{tpu_custom_call.1} parent=55 // pred_check_branch
          %539 = sbr.rel (%p537) target = $region60
        $region59: #{tpu_custom_call.1} parent=55 // pred_region
          %p540 = scmp.lt.s32.totalorder %s27, 1
          %s541 = scalar_select %p540, %s27, 1
          %s542 = scalar_lea.vmem %s2, %s541
        $region60: #{tpu_custom_call.1} parent=55 // pred_fallthru
          _
        // Predicated region
        $region61: #{tpu_custom_call.1} parent=55 // pred_check
          %p543 = pneg %p139
        $region62: #{tpu_custom_call.1} parent=55 // pred_check_branch
          %545 = sbr.rel (%p543) target = $region64
        $region63: #{tpu_custom_call.1} parent=55 // pred_region
          %p546 = scmp.lt.s32.totalorder %s27, 1
          %s547 = scalar_select %p546, %s27, 1
          %s548 = scalar_lea.vmem %s3, %s547
        $region64: #{tpu_custom_call.1} parent=55 // pred_fallthru
          _
      $region56: #{tpu_custom_call.1} parent=5 // pred_fallthru
        _
    $region6: #{tpu_custom_call.1} parent=1 // loop_footer
      %s20 = sadd.s32 1, %s16
    $region7: #{tpu_custom_call.1} parent=1 // loop_footer_branch
      %15 = sbr.rel target = $region3
    $region8: #{tpu_custom_call.1} parent=1 // loop_exit
      _
    %549 = vsyncpa [#allocation5], 1
    %s550 = scalar_lea.sflag [#allocation5], 1
    %551 = vsyncpa %s550, 1
    %552 = vsyncpa [#allocation7], 1
    %s553 = scalar_lea.sflag [#allocation7], 1
    %554 = vsyncpa %s553, 1

</llo_original>
